<compile_context>
chip_gen: v7x
topology: tpu7x:2x2x1
jax: 0.10.0
libtpu: 0.0.40
codegen_flags: <defaults>
</compile_context>

<pallas_src>
import jax
import jax.numpy as jnp
from jax.experimental import pallas as pl
from jax.experimental.pallas import tpu as pltpu


def _round_up(v, m):
    return ((v + m - 1) // m) * m


# ---------------------------------------------------------------------------
# Kernels
# ---------------------------------------------------------------------------

def _linear_kernel(x_ref, w_ref, b_ref, o_ref):
    # Collapsed-K path: one MXU matmul per M tile, bias folded into epilogue.
    # x_ref: (TM, K)  w_ref: (K, N_pad)  b_ref: (1, N_pad) f32  o_ref: (TM, N_pad)
    acc = jnp.dot(x_ref[...], w_ref[...], preferred_element_type=jnp.float32)
    o_ref[...] = (acc + b_ref[...]).astype(o_ref.dtype)


def _linear_kernel_ksplit(x_ref, w_ref, b_ref, o_ref, acc_ref):
    # Fallback for extreme input_dim: K is a trailing "arbitrary" reduction
    # axis; bias is folded into the accumulator init (no extra epilogue add).
    k = pl.program_id(1)

    @pl.when(k == 0)
    def _():
        acc_ref[...] = jnp.broadcast_to(b_ref[...], acc_ref.shape).astype(jnp.float32)

    acc_ref[...] += jnp.dot(x_ref[...], w_ref[...],
                            preferred_element_type=jnp.float32)

    @pl.when(k == pl.num_programs(1) - 1)
    def _():
        o_ref[...] = acc_ref[...].astype(o_ref.dtype)


# ---------------------------------------------------------------------------
# Wrapper
# ---------------------------------------------------------------------------

_VMEM_TILE_BUDGET = 24 * 1024 * 1024   # conservative across v5e/v6e/v7x (64 MiB/TC)
_VMEM_LIMIT_BYTES = 32 * 1024 * 1024   # raise v5e's 16 MiB default scoped limit


def intent_token_classifier(x, weight, bias, dropout_rate=0.0, *, tm_max=1024):
    """Forward pass of IntentTokenClassifier: y = Dropout_p(x) @ W^T + b.

    x:      [batch, seq, input_dim]
    weight: [num_intent_labels, input_dim]   (PyTorch nn.Linear layout)
    bias:   [num_intent_labels]
    returns [batch, seq, num_intent_labels] in x.dtype
    """
    # Dropout with rate 0.0 (the module default / eval mode) is an identity.
    # TODO(synk): training-mode dropout (rate > 0) would need pltpu.prng_* masking.
    if dropout_rate != 0.0:
        raise NotImplementedError("only dropout_rate == 0.0 (inference) is supported")

    batch, seq, K = x.shape
    N = weight.shape[0]
    out_dtype = x.dtype

    M = batch * seq
    N_pad = _round_up(N, 128)            # lane-dense (unmasked) output stores

    xbytes = jnp.dtype(x.dtype).itemsize
    wbytes = jnp.dtype(weight.dtype).itemsize
    obytes = jnp.dtype(out_dtype).itemsize

    # x is consumed in its native dtype — no extra HBM cast/pad pass, and f32
    # numerics match the PyTorch layer.  W^T / bias are tiny, padded once.
    x2d = x.reshape(M, K)
    w_t = jnp.pad(weight, ((0, N_pad - N), (0, 0))).T          # (K, N_pad)
    b2d = jnp.pad(bias.astype(jnp.float32), (0, N_pad - N)).reshape(1, N_pad)

    # ---- M tile: multiple of 8 (sublane), big enough to amortize grid-step
    # overhead, but >= 2 tiles when there is real work (v7x megacore).
    if M <= 256:
        TM = M                            # full-dim block is always layout-legal
    else:
        TM = min(tm_max, _round_up(M, 8))
        TM = min(TM, _round_up(pl.cdiv(_round_up(M, 8), 2), 8))   # >= 2 M tiles
    TM = max(TM, 1)

    # ---- VMEM sizing: double-buffered x / out tiles + resident W^T & bias.
    def _tile_bytes(tm):
        return 2 * tm * K * xbytes + 2 * tm * N_pad * obytes

    w_resident = K * N_pad * wbytes + N_pad * 4
    while TM > 8 and w_resident + _tile_bytes(TM) > _VMEM_TILE_BUDGET:
        TM = max(8, (TM // 2 // 8) * 8)
    use_ksplit = w_resident + _tile_bytes(min(TM, 8)) > _VMEM_TILE_BUDGET

    cost = pl.CostEstimate(
        flops=2 * M * K * N_pad,
        transcendentals=0,
        bytes_accessed=(M * K * xbytes + K * N_pad * wbytes + N_pad * 4
                        + M * N_pad * obytes),
    )
    compiler_params = pltpu.CompilerParams(
        dimension_semantics=(("parallel", "arbitrary") if use_ksplit
                             else ("parallel",)),
        vmem_limit_bytes=_VMEM_LIMIT_BYTES,
    )

    if not use_ksplit:
        # ---- Main path: K collapsed, W^T / bias VMEM-resident, x streamed.
        out = pl.pallas_call(
            _linear_kernel,
            out_shape=jax.ShapeDtypeStruct((M, N_pad), out_dtype),
            grid_spec=pltpu.PrefetchScalarGridSpec(
                num_scalar_prefetch=0,
                grid=(pl.cdiv(M, TM),),
                in_specs=[
                    pl.BlockSpec((TM, K), lambda i: (i, 0)),      # streamed x tile
                    pl.BlockSpec((K, N_pad), lambda i: (0, 0)),   # resident W^T
                    pl.BlockSpec((1, N_pad), lambda i: (0, 0)),   # resident bias
                ],
                out_specs=pl.BlockSpec((TM, N_pad), lambda i: (i, 0)),
            ),
            compiler_params=compiler_params,
            cost_estimate=cost,
        )(x2d, w_t, b2d)
    else:
        # ---- Fallback for extreme input_dim: split K with an f32 accumulator.
        K_pad = _round_up(K, 128)
        TK = 128
        for cand in (2048, 1024, 512, 256):
            if K_pad % cand == 0:
                TK = cand
                break
        while TM > 8 and (2 * TM * TK * xbytes + 2 * TK * N_pad * wbytes
                          + 2 * TM * N_pad * obytes
                          + TM * N_pad * 4) > _VMEM_TILE_BUDGET:
            TM = max(8, (TM // 2 // 8) * 8)
        x2d_p = x2d if K_pad == K else jnp.pad(x2d, ((0, 0), (0, K_pad - K)))
        w_t_p = w_t if K_pad == K else jnp.pad(w_t, ((0, K_pad - K), (0, 0)))
        out = pl.pallas_call(
            _linear_kernel_ksplit,
            out_shape=jax.ShapeDtypeStruct((M, N_pad), out_dtype),
            grid_spec=pltpu.PrefetchScalarGridSpec(
                num_scalar_prefetch=0,
                grid=(pl.cdiv(M, TM), K_pad // TK),
                in_specs=[
                    pl.BlockSpec((TM, TK), lambda i, k: (i, k)),
                    pl.BlockSpec((TK, N_pad), lambda i, k: (k, 0)),
                    pl.BlockSpec((1, N_pad), lambda i, k: (0, 0)),
                ],
                out_specs=pl.BlockSpec((TM, N_pad), lambda i, k: (i, 0)),
                scratch_shapes=[pltpu.VMEM((TM, N_pad), jnp.float32)],
            ),
            compiler_params=compiler_params,
            cost_estimate=cost,
        )(x2d_p, w_t_p, b2d)

    if N_pad != N:
        out = out[:, :N]                  # column-only slice (M is never padded)
    return out.reshape(batch, seq, N)


if __name__ == "__main__":
    # Small, module-consistent shapes.
    batch, seq, input_dim, num_intent_labels = 2, 8, 32, 8

    key = jax.random.PRNGKey(0)
    kx, kw, kb = jax.random.split(key, 3)

    x = jax.random.normal(kx, (batch, seq, input_dim), dtype=jnp.float32)
    # Deterministic parameter init (synthetic; mimics nn.Linear uniform bound).
    bound = 1.0 / (input_dim ** 0.5)
    weight = jax.random.uniform(
        kw, (num_intent_labels, input_dim), minval=-bound, maxval=bound,
        dtype=jnp.float32)
    bias = jax.random.uniform(
        kb, (num_intent_labels,), minval=-bound, maxval=bound,
        dtype=jnp.float32)

    y = intent_token_classifier(x, weight, bias, dropout_rate=0.0)
    y = jax.block_until_ready(y)

    # Reference: plain f32 JAX (matches the PyTorch f32 nn.Linear semantics).
    y_ref = jnp.einsum("bsk,nk->bsn", x, weight) + bias

    assert y.shape == (batch, seq, num_intent_labels)
    assert jnp.allclose(y, y_ref, atol=2e-2, rtol=2e-2), (
        "max abs err:", float(jnp.max(jnp.abs(y - y_ref))))

    print("KERNEL_OK")
</pallas_src>

<mosaic_0001>
module attributes {stable_mosaic.version = 11 : i64} {
  func.func @_linear_kernel(%arg0: i32, %arg1: memref<16x32xf32, #tpu.memory_space<vmem>>, %arg2: memref<32x128xf32, #tpu.memory_space<vmem>>, %arg3: memref<1x128xf32, #tpu.memory_space<vmem>>, %arg4: memref<16x128xf32, #tpu.memory_space<vmem>>) attributes {dimension_semantics = [#tpu.dimension_semantics<parallel>], iteration_bounds = array<i64: 1>, scalar_prefetch = 0 : i64, scratch_operands = 0 : i64, tpu.core_type = #tpu.core_type<tc>, window_params = [{transform_indices = @transform_0, window_bounds = array<i64: 16, 32>}, {pipeline_mode = #tpu.pipeline_mode<synchronous>, transform_indices = @transform_1, window_bounds = array<i64: 32, 128>}, {pipeline_mode = #tpu.pipeline_mode<synchronous>, transform_indices = @transform_2, window_bounds = array<i64: 1, 128>}, {transform_indices = @transform_3, window_bounds = array<i64: 16, 128>}]} {
    %c0 = arith.constant 0 : index
    %c0_0 = arith.constant 0 : index
    %0 = vector.load %arg1[%c0, %c0_0] : memref<16x32xf32, #tpu.memory_space<vmem>>, vector<16x32xf32>
    %c0_1 = arith.constant 0 : index
    %c0_2 = arith.constant 0 : index
    %1 = vector.load %arg2[%c0_1, %c0_2] : memref<32x128xf32, #tpu.memory_space<vmem>>, vector<32x128xf32>
    %cst = arith.constant dense<0.000000e+00> : vector<16x128xf32>
    %2 = tpu.matmul %0, %1, %cst {dimension_numbers = #tpu.dot_dimension_numbers<[1], [0], [0], [1], [0, 0, 1, 1], [], []>} : vector<16x32xf32>, vector<32x128xf32>, vector<16x128xf32> -> vector<16x128xf32>
    %c0_3 = arith.constant 0 : index
    %c0_4 = arith.constant 0 : index
    %3 = vector.load %arg3[%c0_3, %c0_4] : memref<1x128xf32, #tpu.memory_space<vmem>>, vector<1x128xf32>
    %4 = vector.broadcast %3 : vector<1x128xf32> to vector<16x128xf32>
    %5 = arith.addf %2, %4 : vector<16x128xf32>
    %c0_5 = arith.constant 0 : index
    %c0_6 = arith.constant 0 : index
    %6 = vector.load %arg4[%c0_5, %c0_6] : memref<16x128xf32, #tpu.memory_space<vmem>>, vector<16x128xf32>
    tpu.vector_store %arg4[%c0_5, %c0_6], %5 {strides = array<i32>} : memref<16x128xf32, #tpu.memory_space<vmem>>, vector<16x128xf32>,
    return
  }
  func.func @transform_0(%arg0: i32) -> (i32, i32) {
    %c0_i32 = arith.constant 0 : i32
    %c0_i32_0 = arith.constant 0 : i32
    return %arg0, %c0_i32 : i32, i32
  }
  func.func @transform_1(%arg0: i32) -> (i32, i32) {
    %c0_i32 = arith.constant 0 : i32
    %c0_i32_0 = arith.constant 0 : i32
    %c0_i32_1 = arith.constant 0 : i32
    return %c0_i32, %c0_i32_0 : i32, i32
  }
  func.func @transform_2(%arg0: i32) -> (i32, i32) {
    %c0_i32 = arith.constant 0 : i32
    %c0_i32_0 = arith.constant 0 : i32
    %c0_i32_1 = arith.constant 0 : i32
    return %c0_i32, %c0_i32_0 : i32, i32
  }
  func.func @transform_3(%arg0: i32) -> (i32, i32) {
    %c0_i32 = arith.constant 0 : i32
    %c0_i32_0 = arith.constant 0 : i32
    return %arg0, %c0_i32 : i32, i32
  }
}

</mosaic_0001>

<llo_original>
// kernel: tpu_custom_call.1
$region0: #{tpu_custom_call.1}
  #allocation0 [shape = 'u32[]', space=smem, size = 0x4, offset = 0x4, fixed_abs, tag = 'smem constant byte address 0x4 - core index']
  #allocation1 [shape = 'u32[144,128]{1,0:T(1,128)}', space=vmem, size = 0x12000, scoped, tag = 'internal scratch']
  %s0 = inlined_call_operand.hbm [shape: f32[16,32], index: 0, kind: input, shape index: {}]
  %s1 = inlined_call_operand.hbm [shape: f32[32,128], index: 1, kind: input, shape index: {}]
  %s2 = inlined_call_operand.vmem [shape: f32[1,128], index: 2, kind: input, shape index: {}]
  %s3 = inlined_call_operand.hbm [shape: f32[16,128], index: 3, kind: output, shape index: {}]
  %s4 = sld [smem:[#allocation0]]
  $region30: #{tpu_custom_call.1} parent=0
    _
  %s6 = ssub.s32 1, %s4
  %s7 = scalar_select 0, %s6, %s4
  $region1: #{tpu_custom_call.1} parent=0
    #allocation2 [shape = 'u8[8192]{0}', space=vmem, size = 0x2000, scoped, tag = 'input window, operand 0, single buffered']
    #allocation3 [shape = 's32[1]{0}', space=sflag, size = 0x4, scoped, tag = 'scoped memory for tpu_custom_call.1']
    #allocation4 [shape = 's32[1]{0}', space=sflag, size = 0x4, scoped, tag = 'scoped memory for tpu_custom_call.1']
    #allocation5 [shape = 'u8[16384]{0}', space=vmem, size = 0x4000, scoped, tag = 'input window, operand 1, single buffered']
    #allocation6 [shape = 's32[1]{0}', space=sflag, size = 0x4, scoped, tag = 'scoped memory for tpu_custom_call.1']
    #allocation7 [shape = 'u8[8192]{0}', space=vmem, size = 0x2000, scoped, tag = 'output window, operand 0, single buffered']
    %8 = vsyncpa [#allocation3], 0
    %9 = vsyncpa [#allocation6], 0
    %10 = vsyncpa [#allocation4], 0
    // Predicated region
    $region2: #{tpu_custom_call.1} parent=1 // pred_check
      _
    $region3: #{tpu_custom_call.1} parent=1 // pred_check_branch
      %12 = sbr.rel (0) target = $region5
    $region4: #{tpu_custom_call.1} parent=1 // pred_region
      %s14 = ssub.s32 256, 256
      %15 = vsyncadd [#allocation3], %s14
      %s16 = sshll.u32 [#allocation2], 4
      %s17 = int_to_ptr.vmem [resolvable:$true] %s16
      %22 = dma.hbm_to_vmem [thread:$0]  %s0, 256, %s17, [#allocation3], 128, 128, 8
    $region5: #{tpu_custom_call.1} parent=1 // pred_fallthru
      _
    // Predicated region
    $region6: #{tpu_custom_call.1} parent=1 // pred_check
      _
    $region7: #{tpu_custom_call.1} parent=1 // pred_check_branch
      %24 = sbr.rel (0) target = $region9
    $region8: #{tpu_custom_call.1} parent=1 // pred_region
      %s26 = ssub.s32 512, 512
      %27 = vsyncadd [#allocation6], %s26
      %s28 = sshll.u32 [#allocation5], 4
      %s29 = int_to_ptr.vmem [resolvable:$true] %s28
      %34 = dma.hbm_to_vmem [thread:$0]  %s1, 512, %s29, [#allocation6], 128, 128, 8
    $region9: #{tpu_custom_call.1} parent=1 // pred_fallthru
      _
    // Predicated region
    $region10: #{tpu_custom_call.1} parent=1 // pred_check
      _
    $region11: #{tpu_custom_call.1} parent=1 // pred_check_branch
      %36 = sbr.rel (0) target = $region13
    $region12: #{tpu_custom_call.1} parent=1 // pred_region
      _
    $region13: #{tpu_custom_call.1} parent=1 // pred_fallthru
      _
    // Predicated region
    $region14: #{tpu_custom_call.1} parent=1 // pred_check
      _
    $region15: #{tpu_custom_call.1} parent=1 // pred_check_branch
      %38 = sbr.rel (0) target = $region17
    $region16: #{tpu_custom_call.1} parent=1 // pred_region
      %39 = dma.done [#allocation3], 256
    $region17: #{tpu_custom_call.1} parent=1 // pred_fallthru
      _
    // Predicated region
    $region18: #{tpu_custom_call.1} parent=1 // pred_check
      _
    $region19: #{tpu_custom_call.1} parent=1 // pred_check_branch
      %41 = sbr.rel (0) target = $region21
    $region20: #{tpu_custom_call.1} parent=1 // pred_region
      %42 = dma.done [#allocation6], 512
    $region21: #{tpu_custom_call.1} parent=1 // pred_fallthru
      _
    %v43 = vld [vmem:[#allocation2] sm:$0xff]
    %v44 = vld [vmem:[#allocation2 + $0x8] sm:$0xff]
    %v45 = vld [vmem:[#allocation5] sm:$0xff]
    %v46 = vld [vmem:[#allocation5 + $0x8] sm:$0xff]
    %v47 = vld [vmem:[#allocation5 + $0x10] sm:$0xff]
    %v48 = vld [vmem:[#allocation5 + $0x18] sm:$0xff]
    %v49 = vld [vmem:[%s2] sm:$0x1]
    %v51 = vlaneseq
    %v52 = vshrl.u32 %v51, 7
    %v53 = vsub.s32 0, %v52
    %v54 = vrot.slane %v49, %v53
    %vm56 = vcmask 261120
    %v58 = vsel %vm56, %v43, 0
    %v61 = vsel %vm56, %v44, 0
    %63 = vmatprep.subr.mxu0 0.0
    %64 = vmatpush1.msra.mxu0 %v45
    %65 = vmatprep.subr.mxu0 0.0
    %66 = vmatpush1.msra.mxu0 %v46
    %67 = vmatprep.subr.mxu0 0.0
    %68 = vmatpush1.msra.mxu0 %v47
    %69 = vmatprep.subr.mxu0 0.0
    %70 = vmatpush1.msra.mxu0 %v48
    %71 = vmatprep.subr.mxu0 0.0
    %72 = vmatpush1.msra.mxu0 0.0
    %73 = vmatprep.subr.mxu0 0.0
    %74 = vmatpush1.msra.mxu0 0.0
    %75 = vmatprep.subr.mxu0 0.0
    %76 = vmatpush1.msra.mxu0 0.0
    %77 = vmatprep.subr.mxu0 0.0
    %78 = vmatpush1.msra.mxu0 0.0
    %79 = vmatprep.subr.mxu0 0.0
    %80 = vmatpush1.msra.mxu0 0.0
    %81 = vmatprep.subr.mxu0 0.0
    %82 = vmatpush1.msra.mxu0 0.0
    %83 = vmatprep.subr.mxu0 0.0
    %84 = vmatpush1.msra.mxu0 0.0
    %85 = vmatprep.subr.mxu0 0.0
    %86 = vmatpush1.msra.mxu0 0.0
    %87 = vmatprep.subr.mxu0 0.0
    %88 = vmatpush1.msra.mxu0 0.0
    %89 = vmatprep.subr.mxu0 0.0
    %90 = vmatpush1.msra.mxu0 0.0
    %91 = vmatprep.subr.mxu0 0.0
    %92 = vmatpush1.msra.mxu0 0.0
    %93 = vmatprep.subr.mxu0 0.0
    %94 = vmatpush1.msra.mxu0 0.0
    %95 = vmatprep.subr.mxu0 0.0
    %96 = vmatpush1.msra.mxu0 0.0
    %97 = vmatprep.subr.mxu0 0.0
    %98 = vmatpush1.msra.mxu0 0.0
    %99 = vmatprep.subr.mxu0 0.0
    %100 = vmatpush1.msra.mxu0 0.0
    %101 = vmatprep.subr.mxu0 0.0
    %102 = vmatpush1.msra.mxu0 0.0
    %103 = vmatprep.subr.mxu0 0.0
    %104 = vmatpush1.msra.mxu0 0.0
    %105 = vmatprep.subr.mxu0 0.0
    %106 = vmatpush1.msra.mxu0 0.0
    %107 = vmatprep.subr.mxu0 0.0
    %108 = vmatpush1.msra.mxu0 0.0
    %109 = vmatprep.subr.mxu0 0.0
    %110 = vmatpush1.msra.mxu0 0.0
    %111 = vmatprep.subr.mxu0 0.0
    %112 = vmatpush1.msra.mxu0 0.0
    %113 = vmatprep.subr.mxu0 0.0
    %114 = vmatpush1.msra.mxu0 0.0
    %115 = vmatprep.subr.mxu0 0.0
    %116 = vmatpush1.msra.mxu0 0.0
    %117 = vmatprep.subr.mxu0 0.0
    %118 = vmatpush1.msra.mxu0 0.0
    %119 = vmatprep.subr.mxu0 0.0
    %120 = vmatpush1.msra.mxu0 0.0
    %121 = vmatprep.subr.mxu0 0.0
    %122 = vmatpush1.msra.mxu0 0.0
    %123 = vmatprep.subr.mxu0 0.0
    %124 = vmatpush1.msra.mxu0 0.0
    %125 = vmatprep.subr.mxu0 0.0
    %126 = vmatpush1.msra.mxu0 0.0
    %127 = vmatprep.mubr.f32.mxu0 0.0
    %128 = vmatmul.mubr.f32.gmra.mrb[0].mxu0 %v58
    %v129 = vpop.f32.mrb[0].mxu0
    %v130 = vadd.f32 %v54, %v129
    %v131 = vpop.f32.mrb[0].mxu0
    %132 = vmatprep.mubr.f32.mxu0 0.0
    %133 = vmatmul.mubr.f32.gmra.mrb[0].mxu0 %v61
    %v134 = vpop.f32.mrb[0].mxu0
    %v135 = vadd.f32 %v54, %v134
    %v136 = vpop.f32.mrb[0].mxu0
    %137 = vdwg.mxu0
    %138 = vst [vmem:[#allocation7] sm:$0xff] %v130
    %139 = vst [vmem:[#allocation7 + $0x8] sm:$0xff] %v135
    // Predicated region
    $region22: #{tpu_custom_call.1} parent=1 // pred_check
      _
    $region23: #{tpu_custom_call.1} parent=1 // pred_check_branch
      %141 = sbr.rel (0) target = $region25
    $region24: #{tpu_custom_call.1} parent=1 // pred_region
      %s143 = ssub.s32 256, 256
      %144 = vsyncadd [#allocation4], %s143
      %s145 = sshll.u32 [#allocation7], 4
      %s146 = int_to_ptr.vmem [resolvable:$true] %s145
      %151 = dma.vmem_to_hbm [thread:$0]  %s146, 256, %s3, [#allocation4], 128, 128, 8
    $region25: #{tpu_custom_call.1} parent=1 // pred_fallthru
      _
    // Predicated region
    $region26: #{tpu_custom_call.1} parent=1 // pred_check
      _
    $region27: #{tpu_custom_call.1} parent=1 // pred_check_branch
      %153 = sbr.rel (0) target = $region29
    $region28: #{tpu_custom_call.1} parent=1 // pred_region
      %154 = dma.done [#allocation4], 256
    $region29: #{tpu_custom_call.1} parent=1 // pred_fallthru
      _
    %155 = vsyncpa [#allocation3], 1
    %156 = vsyncpa [#allocation6], 1
    %157 = vsyncpa [#allocation4], 1

</llo_original>
